<compile_context>
chip_gen: v7x
topology: tpu7x:2x2x1
jax: 0.10.0
libtpu: 0.0.40
codegen_flags: <defaults>
</compile_context>

<pallas_src>
import functools

import jax
import jax.numpy as jnp
from jax import lax
from jax.experimental import pallas as pl
from jax.experimental.pallas import tpu as pltpu


def _mha_kernel(x_ref, wqkv_ref, bqkv_ref, out_ref, attn_ref, o_scr,
                *, num_heads, head_dim):
    """One grid step == one (batch, head) pair. Head axis is last / 'arbitrary'."""
    h = pl.program_id(1)
    hd = head_dim

    x = x_ref[0]          # (S, D)
    w = wqkv_ref[0]       # (D, 3*hd)  this head's fused [Wq_h | Wk_h | Wv_h]
    b = bqkv_ref[0]       # (1, 3*hd)

    # Fused projection for this head: q, k, v in a single MXU matmul + one bias add.
    qkv = jnp.dot(x, w, preferred_element_type=jnp.float32) + b     # (S, 3*hd)
    qh = qkv[:, :hd]
    kh = qkv[:, hd:2 * hd]
    vh = qkv[:, 2 * hd:]

    scale = 1.0 / (hd ** 0.5)
    # Contract the last dims directly — no explicit kh.T / cross-lane transpose.
    scores = lax.dot_general(qh, kh, (((1,), (1,)), ((), ())),
                             preferred_element_type=jnp.float32) * scale   # (S, S)
    # TODO(synk): optional `mask` argument of the PyTorch forward not implemented
    # (default call path uses mask=None).

    # Numerically-stable softmax; reciprocal goes to the (otherwise idle) EUP slot.
    m = jnp.max(scores, axis=-1, keepdims=True)
    e = jnp.exp(scores - m)
    denom = jnp.sum(e, axis=-1, keepdims=True)
    weights = e * pl.reciprocal(denom, approx=True)                        # (S, S)

    attn_ref[0, 0] = weights                       # per-(batch, head) attention tile

    # Stash this head's output; the (S, D) slab is assembled once at the last head.
    o_scr[h] = jnp.dot(weights, vh, preferred_element_type=jnp.float32)    # (S, hd)

    @pl.when(h == num_heads - 1)
    def _():
        # Single lane-dense full-width store instead of H masked lane-narrow stores.
        out_ref[0] = jnp.concatenate([o_scr[i] for i in range(num_heads)], axis=-1)


def multi_head_attention(x, wq, bq, wk, bk, wv, bv, *, num_heads):
    B, S, D = x.shape
    assert D % num_heads == 0
    hd = D // num_heads

    # Wrapper-side weight fusion / head split (pure layout plumbing, done by XLA):
    #   wqkv[h] = [Wq[:, h*hd:(h+1)*hd] | Wk[...] | Wv[...]]  -> (H, D, 3*hd)
    wqkv = jnp.concatenate([wq.reshape(D, num_heads, hd),
                            wk.reshape(D, num_heads, hd),
                            wv.reshape(D, num_heads, hd)], axis=-1)   # (D, H, 3*hd)
    wqkv = jnp.transpose(wqkv, (1, 0, 2))                              # (H, D, 3*hd)
    bqkv = jnp.concatenate([bq.reshape(num_heads, 1, hd),
                            bk.reshape(num_heads, 1, hd),
                            bv.reshape(num_heads, 1, hd)], axis=-1)    # (H, 1, 3*hd)

    kernel = functools.partial(_mha_kernel, num_heads=num_heads, head_dim=hd)

    # Rough VMEM budget (bytes): blocks (double-buffered by Pallas) + scratch.
    f32 = 4
    budget = f32 * (S * D + D * 3 * hd + 3 * hd          # x, w, b blocks
                    + S * D + S * S                      # out, attn blocks
                    + num_heads * S * hd)                # o_scr scratch
    vmem_limit = int(min(64 * 1024 * 1024, max(32 * 1024 * 1024, 8 * budget)))

    out, attn = pl.pallas_call(
        kernel,
        out_shape=(
            jax.ShapeDtypeStruct((B, S, D), jnp.float32),
            jax.ShapeDtypeStruct((B, num_heads, S, S), jnp.float32),
        ),
        grid_spec=pltpu.PrefetchScalarGridSpec(
            num_scalar_prefetch=0,
            grid=(B, num_heads),                                   # head axis last
            in_specs=[
                pl.BlockSpec((1, S, D), lambda b, h: (b, 0, 0)),       # x (resident over h)
                pl.BlockSpec((1, D, 3 * hd), lambda b, h: (h, 0, 0)),  # fused W for head h
                pl.BlockSpec((1, 1, 3 * hd), lambda b, h: (h, 0, 0)),  # fused b for head h
            ],
            out_specs=[
                pl.BlockSpec((1, S, D), lambda b, h: (b, 0, 0)),        # out: written at last h
                pl.BlockSpec((1, 1, S, S), lambda b, h: (b, h, 0, 0)),  # attn: per-head tile
            ],
            scratch_shapes=[
                pltpu.VMEM((num_heads, S, hd), jnp.float32),            # per-head outputs
            ],
        ),
        compiler_params=pltpu.CompilerParams(
            dimension_semantics=("parallel", "arbitrary"),
            vmem_limit_bytes=vmem_limit,
        ),
    )(x, wqkv, bqkv)
    # TODO(synk): for long sequences, add a query-tile grid axis so the attn block
    # becomes (1, 1, tq, S) and stays within VMEM on v7x.
    return out, attn


def _reference(x, wq, bq, wk, bk, wv, bv, num_heads):
    B, S, D = x.shape
    hd = D // num_heads
    q = (x @ wq + bq).reshape(B, S, num_heads, hd).transpose(0, 2, 1, 3)
    k = (x @ wk + bk).reshape(B, S, num_heads, hd).transpose(0, 2, 1, 3)
    v = (x @ wv + bv).reshape(B, S, num_heads, hd).transpose(0, 2, 1, 3)
    scores = jnp.einsum("bhqd,bhkd->bhqk", q, k) / (hd ** 0.5)
    attn = jax.nn.softmax(scores, axis=-1)
    out = jnp.einsum("bhqk,bhkd->bhqd", attn, v)
    out = out.transpose(0, 2, 1, 3).reshape(B, S, D)
    return out, attn


if __name__ == "__main__":
    B, S, D, H = 2, 8, 32, 4   # batch, seq, d_model, num_heads (head_dim = 8)

    key = jax.random.PRNGKey(0)
    kx, k1, k2, k3, k4, k5, k6 = jax.random.split(key, 7)

    x = jax.random.normal(kx, (B, S, D), dtype=jnp.float32)
    # Deterministic synthetic parameters (torch.nn.Linear would use uniform init;
    # exact init values don't matter, only shapes/semantics).
    wq = jax.random.normal(k1, (D, D), dtype=jnp.float32) * 0.1
    bq = jax.random.normal(k2, (D,), dtype=jnp.float32) * 0.1
    wk = jax.random.normal(k3, (D, D), dtype=jnp.float32) * 0.1
    bk = jax.random.normal(k4, (D,), dtype=jnp.float32) * 0.1
    wv = jax.random.normal(k5, (D, D), dtype=jnp.float32) * 0.1
    bv = jax.random.normal(k6, (D,), dtype=jnp.float32) * 0.1

    out, attn = multi_head_attention(x, wq, bq, wk, bk, wv, bv, num_heads=H)
    jax.block_until_ready((out, attn))

    out_ref, attn_ref = _reference(x, wq, bq, wk, bk, wv, bv, H)
    assert out.shape == (B, S, D) and attn.shape == (B, H, S, S)
    # Tolerance accounts for the EUP approximate reciprocal in the softmax denom.
    assert jnp.allclose(out, out_ref, atol=2e-3, rtol=2e-3)
    assert jnp.allclose(attn, attn_ref, atol=2e-3, rtol=2e-3)

    print("KERNEL_OK")
</pallas_src>

<mosaic_0001>
module attributes {stable_mosaic.version = 11 : i64} {
  func.func @_mha_kernel(%arg0: i32, %arg1: i32, %arg2: memref<1x8x32xf32, #tpu.memory_space<vmem>>, %arg3: memref<1x32x24xf32, #tpu.memory_space<vmem>>, %arg4: memref<1x1x24xf32, #tpu.memory_space<vmem>>, %arg5: memref<1x8x32xf32, #tpu.memory_space<vmem>>, %arg6: memref<1x1x8x8xf32, #tpu.memory_space<vmem>>, %arg7: memref<4x8x8xf32, #tpu.memory_space<vmem>>) attributes {dimension_semantics = [#tpu.dimension_semantics<parallel>, #tpu.dimension_semantics<arbitrary>], iteration_bounds = array<i64: 2, 4>, scalar_prefetch = 0 : i64, scratch_operands = 1 : i64, tpu.core_type = #tpu.core_type<tc>, window_params = [{transform_indices = @transform_0, window_bounds = array<i64: 1, 8, 32>}, {transform_indices = @transform_1, window_bounds = array<i64: 1, 32, 24>}, {transform_indices = @transform_2, window_bounds = array<i64: 1, 1, 24>}, {transform_indices = @transform_3, window_bounds = array<i64: 1, 8, 32>}, {transform_indices = @transform_4, window_bounds = array<i64: 1, 1, 8, 8>}]} {
    %c0 = arith.constant 0 : index
    %c0_0 = arith.constant 0 : index
    %c0_1 = arith.constant 0 : index
    %0 = vector.load %arg2[%c0, %c0_0, %c0_1] : memref<1x8x32xf32, #tpu.memory_space<vmem>>, vector<1x8x32xf32>
    %1 = vector.shape_cast %0 : vector<1x8x32xf32> to vector<8x32xf32>
    %c0_2 = arith.constant 0 : index
    %c0_3 = arith.constant 0 : index
    %c0_4 = arith.constant 0 : index
    %2 = vector.load %arg3[%c0_2, %c0_3, %c0_4] : memref<1x32x24xf32, #tpu.memory_space<vmem>>, vector<1x32x24xf32>
    %3 = vector.shape_cast %2 : vector<1x32x24xf32> to vector<32x24xf32>
    %c0_5 = arith.constant 0 : index
    %c0_6 = arith.constant 0 : index
    %c0_7 = arith.constant 0 : index
    %4 = vector.load %arg4[%c0_5, %c0_6, %c0_7] : memref<1x1x24xf32, #tpu.memory_space<vmem>>, vector<1x1x24xf32>
    %5 = vector.shape_cast %4 : vector<1x1x24xf32> to vector<1x24xf32>
    %cst = arith.constant dense<0.000000e+00> : vector<8x24xf32>
    %6 = tpu.matmul %1, %3, %cst {dimension_numbers = #tpu.dot_dimension_numbers<[1], [0], [0], [1], [0, 0, 1, 1], [], []>} : vector<8x32xf32>, vector<32x24xf32>, vector<8x24xf32> -> vector<8x24xf32>
    %7 = vector.broadcast %5 : vector<1x24xf32> to vector<8x24xf32>
    %8 = arith.addf %6, %7 : vector<8x24xf32>
    %9 = vector.extract_strided_slice %8 {offsets = [0, 0], sizes = [8, 8], strides = [1, 1]} : vector<8x24xf32> to vector<8x8xf32>
    %10 = vector.extract_strided_slice %8 {offsets = [0, 8], sizes = [8, 8], strides = [1, 1]} : vector<8x24xf32> to vector<8x8xf32>
    %11 = vector.extract_strided_slice %8 {offsets = [0, 16], sizes = [8, 8], strides = [1, 1]} : vector<8x24xf32> to vector<8x8xf32>
    %cst_8 = arith.constant dense<0.000000e+00> : vector<8x8xf32>
    %12 = tpu.matmul %9, %10, %cst_8 {dimension_numbers = #tpu.dot_dimension_numbers<[1], [1], [0], [0], [0, 0, 1, 0], [], []>} : vector<8x8xf32>, vector<8x8xf32>, vector<8x8xf32> -> vector<8x8xf32>
    %cst_9 = arith.constant 0.353553385 : f32
    %13 = vector.broadcast %cst_9 : f32 to vector<8x8xf32>
    %14 = arith.mulf %12, %13 : vector<8x8xf32>
    %cst_10 = arith.constant dense<0xFF800000> : vector<8xf32>
    %15 = vector.multi_reduction <maximumf>, %14, %cst_10 [1] : vector<8x8xf32> to vector<8xf32>
    %16 = vector.shape_cast %15 : vector<8xf32> to vector<8x1xf32>
    %17 = vector.broadcast %16 : vector<8x1xf32> to vector<8x8xf32>
    %18 = arith.subf %14, %17 : vector<8x8xf32>
    %19 = math.exp %18 : vector<8x8xf32>
    %cst_11 = arith.constant dense<0.000000e+00> : vector<8xf32>
    %20 = vector.multi_reduction <add>, %19, %cst_11 [1] : vector<8x8xf32> to vector<8xf32>
    %21 = vector.shape_cast %20 : vector<8xf32> to vector<8x1xf32>
    %22 = tpu.reciprocal %21 {approx = true} : vector<8x1xf32> -> vector<8x1xf32>
    %23 = vector.broadcast %22 : vector<8x1xf32> to vector<8x8xf32>
    %24 = arith.mulf %19, %23 : vector<8x8xf32>
    %c0_12 = arith.constant 0 : index
    %c0_13 = arith.constant 0 : index
    %c0_14 = arith.constant 0 : index
    %c0_15 = arith.constant 0 : index
    %25 = vector.load %arg6[%c0_12, %c0_13, %c0_14, %c0_15] : memref<1x1x8x8xf32, #tpu.memory_space<vmem>>, vector<1x1x8x8xf32>
    %26 = vector.shape_cast %25 : vector<1x1x8x8xf32> to vector<8x8xf32>
    %27 = vector.shape_cast %24 : vector<8x8xf32> to vector<1x1x8x8xf32>
    tpu.vector_store %arg6[%c0_12, %c0_13, %c0_14, %c0_15], %27 {strides = array<i32>} : memref<1x1x8x8xf32, #tpu.memory_space<vmem>>, vector<1x1x8x8xf32>,
    %cst_16 = arith.constant dense<0.000000e+00> : vector<8x8xf32>
    %28 = tpu.matmul %24, %11, %cst_16 {dimension_numbers = #tpu.dot_dimension_numbers<[1], [0], [0], [1], [0, 0, 1, 1], [], []>} : vector<8x8xf32>, vector<8x8xf32>, vector<8x8xf32> -> vector<8x8xf32>
    %29 = arith.index_cast %arg1 : i32 to index
    %c0_17 = arith.constant 0 : index
    %c0_18 = arith.constant 0 : index
    %30 = vector.load %arg7[%29, %c0_17, %c0_18] : memref<4x8x8xf32, #tpu.memory_space<vmem>>, vector<1x8x8xf32>
    %31 = vector.shape_cast %30 : vector<1x8x8xf32> to vector<8x8xf32>
    %32 = vector.shape_cast %28 : vector<8x8xf32> to vector<1x8x8xf32>
    tpu.vector_store %arg7[%29, %c0_17, %c0_18], %32 {strides = array<i32>} : memref<4x8x8xf32, #tpu.memory_space<vmem>>, vector<1x8x8xf32>,
    %c3_i32 = arith.constant 3 : i32
    %33 = arith.cmpi eq, %arg1, %c3_i32 : i32
    %34 = arith.extui %33 : i1 to i32
    %c0_i32 = arith.constant 0 : i32
    %35 = arith.cmpi ne, %34, %c0_i32 : i32
    scf.if %35 {
      %c0_19 = arith.constant 0 : index
      %c0_20 = arith.constant 0 : index
      %c0_21 = arith.constant 0 : index
      %36 = vector.load %arg7[%c0_19, %c0_20, %c0_21] : memref<4x8x8xf32, #tpu.memory_space<vmem>>, vector<1x8x8xf32>
      %37 = vector.shape_cast %36 : vector<1x8x8xf32> to vector<8x8xf32>
      %c1 = arith.constant 1 : index
      %c0_22 = arith.constant 0 : index
      %c0_23 = arith.constant 0 : index
      %38 = vector.load %arg7[%c1, %c0_22, %c0_23] : memref<4x8x8xf32, #tpu.memory_space<vmem>>, vector<1x8x8xf32>
      %39 = vector.shape_cast %38 : vector<1x8x8xf32> to vector<8x8xf32>
      %c2 = arith.constant 2 : index
      %c0_24 = arith.constant 0 : index
      %c0_25 = arith.constant 0 : index
      %40 = vector.load %arg7[%c2, %c0_24, %c0_25] : memref<4x8x8xf32, #tpu.memory_space<vmem>>, vector<1x8x8xf32>
      %41 = vector.shape_cast %40 : vector<1x8x8xf32> to vector<8x8xf32>
      %c3 = arith.constant 3 : index
      %c0_26 = arith.constant 0 : index
      %c0_27 = arith.constant 0 : index
      %42 = vector.load %arg7[%c3, %c0_26, %c0_27] : memref<4x8x8xf32, #tpu.memory_space<vmem>>, vector<1x8x8xf32>
      %43 = vector.shape_cast %42 : vector<1x8x8xf32> to vector<8x8xf32>
      %44 = tpu.concatenate %37, %39, %41, %43 in 1 : vector<8x8xf32>, vector<8x8xf32>, vector<8x8xf32>, vector<8x8xf32> -> vector<8x32xf32>
      %c0_28 = arith.constant 0 : index
      %c0_29 = arith.constant 0 : index
      %c0_30 = arith.constant 0 : index
      %45 = vector.load %arg5[%c0_28, %c0_29, %c0_30] : memref<1x8x32xf32, #tpu.memory_space<vmem>>, vector<1x8x32xf32>
      %46 = vector.shape_cast %45 : vector<1x8x32xf32> to vector<8x32xf32>
      %47 = vector.shape_cast %44 : vector<8x32xf32> to vector<1x8x32xf32>
      tpu.vector_store %arg5[%c0_28, %c0_29, %c0_30], %47 {strides = array<i32>} : memref<1x8x32xf32, #tpu.memory_space<vmem>>, vector<1x8x32xf32>,
    } else {
    }
    return
  }
  func.func @transform_0(%arg0: i32, %arg1: i32) -> (i32, i32, i32) {
    %c0_i32 = arith.constant 0 : i32
    %c0_i32_0 = arith.constant 0 : i32
    %c0_i32_1 = arith.constant 0 : i32
    return %arg0, %c0_i32, %c0_i32_0 : i32, i32, i32
  }
  func.func @transform_1(%arg0: i32, %arg1: i32) -> (i32, i32, i32) {
    %c0_i32 = arith.constant 0 : i32
    %c0_i32_0 = arith.constant 0 : i32
    %c0_i32_1 = arith.constant 0 : i32
    return %arg1, %c0_i32, %c0_i32_0 : i32, i32, i32
  }
  func.func @transform_2(%arg0: i32, %arg1: i32) -> (i32, i32, i32) {
    %c0_i32 = arith.constant 0 : i32
    %c0_i32_0 = arith.constant 0 : i32
    %c0_i32_1 = arith.constant 0 : i32
    return %arg1, %c0_i32, %c0_i32_0 : i32, i32, i32
  }
  func.func @transform_3(%arg0: i32, %arg1: i32) -> (i32, i32, i32) {
    %c0_i32 = arith.constant 0 : i32
    %c0_i32_0 = arith.constant 0 : i32
    %c0_i32_1 = arith.constant 0 : i32
    return %arg0, %c0_i32, %c0_i32_0 : i32, i32, i32
  }
  func.func @transform_4(%arg0: i32, %arg1: i32) -> (i32, i32, i32, i32) {
    %c0_i32 = arith.constant 0 : i32
    %c0_i32_0 = arith.constant 0 : i32
    %c0_i32_1 = arith.constant 0 : i32
    return %arg0, %arg1, %c0_i32, %c0_i32_0 : i32, i32, i32, i32
  }
}

</mosaic_0001>

<llo_original>
// kernel: tpu_custom_call.1
$region0: #{tpu_custom_call.1}
  #allocation0 [shape = 'u32[]', space=smem, size = 0x4, offset = 0x4, fixed_abs, tag = 'smem constant byte address 0x4 - core index']
  #allocation1 [shape = 'u32[144,128]{1,0:T(1,128)}', space=vmem, size = 0x12000, scoped, tag = 'internal scratch']
  #allocation2 [shape = 'f32[4,8,8]{2,1,0:T(8,128)}', space=vmem, size = 0x4000, scoped, tag = 'scratch operand']
  %s0 = inlined_call_operand.vmem [shape: f32[2,8,32], index: 0, kind: input, shape index: {}]
  %s1 = inlined_call_operand.vmem [shape: f32[4,32,24], index: 1, kind: input, shape index: {}]
  %s2 = inlined_call_operand.vmem [shape: f32[4,1,24], index: 2, kind: input, shape index: {}]
  %s3 = inlined_call_operand.hbm [shape: f32[2,8,32], index: 3, kind: output, shape index: {0}]
  %s4 = inlined_call_operand.hbm [shape: f32[2,4,8,8], index: 4, kind: output, shape index: {1}]
  %5 = xla_tuple %s3, %s4
  %s6 = sld [smem:[#allocation0]]
  $region57: #{tpu_custom_call.1} parent=0
    _
  %s8 = ssub.s32 1, %s6
  %s9 = scalar_select 0, %s8, %s6
  $region1: #{tpu_custom_call.1} parent=0
    #allocation3 [shape = 'u8[8192]{0}', space=vmem, size = 0x2000, scoped, tag = 'output window, operand 0']
    #allocation4 [shape = 's32[2]{0}', space=sflag, size = 0x8, scoped, tag = 'scoped memory for tpu_custom_call.1']
    #allocation5 [shape = 'u8[8192]{0}', space=vmem, size = 0x2000, scoped, tag = 'output window, operand 1']
    #allocation6 [shape = 's32[2]{0}', space=sflag, size = 0x8, scoped, tag = 'scoped memory for tpu_custom_call.1']
    %10 = vsyncpa [#allocation4], 0
    %s11 = scalar_lea.sflag [#allocation4], 1
    %12 = vsyncpa %s11, 0
    %13 = vsyncpa [#allocation6], 0
    %s14 = scalar_lea.sflag [#allocation6], 1
    %15 = vsyncpa %s14, 0
    loop: start=0, step=1, limit=10
    $region2: #{tpu_custom_call.1} parent=1 // loop_pre_header
      _
    $region3: #{tpu_custom_call.1} parent=1 // loop_header
      %s17 = sphi 0, %s21
      %p18 = scmp.ge.s32.totalorder %s17, 10
      %s24 = sphi 0, %s36
      %s25 = sphi 0, %s32
      %s26 = sphi 0, %s24
      %s27 = sphi 0, %s25
      %s28 = sphi 0, %s26
      %s29 = sphi 0, %s27
      %s39 = sphi 0, %s41
      %s42 = sphi 0, %s39
      %s43 = sphi 0, %s42
      %s59 = sphi 0, %s43
      %s65 = sphi 0, %s67
      %s68 = sphi 0, %s65
      %s69 = sphi 0, %s68
      %s85 = sphi 0, %s69
      %s91 = sphi 0, %s93
      %s94 = sphi 0, %s91
      %s95 = sphi 0, %s94
      %s111 = sphi 0, %s95
      %s117 = sphi 0, %s119
      %s120 = sphi 0, %s117
      %s121 = sphi 0, %s120
      %s137 = sphi 0, %s121
      %s145 = sphi 0, %s147
      %s148 = sphi 0, %s145
      %s149 = sphi 0, %s148
      %s165 = sphi 0, %s149
    $region4: #{tpu_custom_call.1} parent=1 // loop_header_branch
      %20 = sbr.rel (%p18) target = $region8
    $region5: #{tpu_custom_call.1} parent=1 // loop_body
      %s22 = ssub.s32 %s17, 1
      %s23 = ssub.s32 %s17, 2
      %s30 = sadd.s32 1, %s25
      %p31 = scmp.ge.s32.totalorder %s30, 4
      %s32 = scalar_select %p31, 0, %s30
      %s33 = sadd.s32 1, %s24
      %s34 = scalar_select %p31, %s33, %s24
      %p35 = scmp.ge.s32.totalorder %s34, 2
      %s36 = scalar_select %p35, 0, %s34
      %s37 = ssub.s32 %s24, %s36
      %p38 = scmp.eq.s32.totalorder %s37, 0
      %s40 = sadd.s32 %s39, 1
      %s41 = scalar_select %p38, %s39, %s40
      %p44 = pneg %p38
      %p45 = scmp.eq.s32.totalorder %s17, 7
      %p46 = por %p44, %p45
      %p47 = scmp.ne.s32.totalorder %s39, %s42
      %p48 = scmp.eq.s32.totalorder %s17, 0
      %p49 = por %p47, %p48
      %p50 = scmp.ne.s32.totalorder %s39, %s42
      %p51 = scmp.eq.s32.totalorder %s22, 7
      %p52 = por %p50, %p51
      %p53 = scmp.ne.s32.totalorder %s42, %s43
      %p54 = scmp.eq.s32.totalorder %s22, 0
      %p55 = por %p53, %p54
      %p56 = scmp.ne.s32.totalorder %s42, %s43
      %p57 = scmp.eq.s32.totalorder %s23, 7
      %p58 = por %p56, %p57
      %p60 = scmp.ne.s32.totalorder %s43, %s59
      %p61 = scmp.eq.s32.totalorder %s23, 0
      %p62 = por %p60, %p61
      %s63 = ssub.s32 %s25, %s32
      %p64 = scmp.eq.s32.totalorder %s63, 0
      %s66 = sadd.s32 %s65, 1
      %s67 = scalar_select %p64, %s65, %s66
      %p70 = pneg %p64
      %p71 = scmp.eq.s32.totalorder %s17, 7
      %p72 = por %p70, %p71
      %p73 = scmp.ne.s32.totalorder %s65, %s68
      %p74 = scmp.eq.s32.totalorder %s17, 0
      %p75 = por %p73, %p74
      %p76 = scmp.ne.s32.totalorder %s65, %s68
      %p77 = scmp.eq.s32.totalorder %s22, 7
      %p78 = por %p76, %p77
      %p79 = scmp.ne.s32.totalorder %s68, %s69
      %p80 = scmp.eq.s32.totalorder %s22, 0
      %p81 = por %p79, %p80
      %p82 = scmp.ne.s32.totalorder %s68, %s69
      %p83 = scmp.eq.s32.totalorder %s23, 7
      %p84 = por %p82, %p83
      %p86 = scmp.ne.s32.totalorder %s69, %s85
      %p87 = scmp.eq.s32.totalorder %s23, 0
      %p88 = por %p86, %p87
      %s89 = ssub.s32 %s25, %s32
      %p90 = scmp.eq.s32.totalorder %s89, 0
      %s92 = sadd.s32 %s91, 1
      %s93 = scalar_select %p90, %s91, %s92
      %p96 = pneg %p90
      %p97 = scmp.eq.s32.totalorder %s17, 7
      %p98 = por %p96, %p97
      %p99 = scmp.ne.s32.totalorder %s91, %s94
      %p100 = scmp.eq.s32.totalorder %s17, 0
      %p101 = por %p99, %p100
      %p102 = scmp.ne.s32.totalorder %s91, %s94
      %p103 = scmp.eq.s32.totalorder %s22, 7
      %p104 = por %p102, %p103
      %p105 = scmp.ne.s32.totalorder %s94, %s95
      %p106 = scmp.eq.s32.totalorder %s22, 0
      %p107 = por %p105, %p106
      %p108 = scmp.ne.s32.totalorder %s94, %s95
      %p109 = scmp.eq.s32.totalorder %s23, 7
      %p110 = por %p108, %p109
      %p112 = scmp.ne.s32.totalorder %s95, %s111
      %p113 = scmp.eq.s32.totalorder %s23, 0
      %p114 = por %p112, %p113
      %s115 = ssub.s32 %s24, %s36
      %p116 = scmp.eq.s32.totalorder %s115, 0
      %s118 = sadd.s32 %s117, 1
      %s119 = scalar_select %p116, %s117, %s118
      %p122 = pneg %p116
      %p123 = scmp.eq.s32.totalorder %s17, 7
      %p124 = por %p122, %p123
      %p125 = scmp.ne.s32.totalorder %s117, %s120
      %p126 = scmp.eq.s32.totalorder %s17, 0
      %p127 = por %p125, %p126
      %p128 = scmp.ne.s32.totalorder %s117, %s120
      %p129 = scmp.eq.s32.totalorder %s22, 7
      %p130 = por %p128, %p129
      %p131 = scmp.ne.s32.totalorder %s120, %s121
      %p132 = scmp.eq.s32.totalorder %s22, 0
      %p133 = por %p131, %p132
      %p134 = scmp.ne.s32.totalorder %s120, %s121
      %p135 = scmp.eq.s32.totalorder %s23, 7
      %p136 = por %p134, %p135
      %p138 = scmp.ne.s32.totalorder %s121, %s137
      %p139 = scmp.eq.s32.totalorder %s23, 0
      %p140 = por %p138, %p139
      %s141 = ssub.s32 %s24, %s36
      %s142 = ssub.s32 %s25, %s32
      %s143 = sor.u32 %s141, %s142
      %p144 = scmp.eq.s32.totalorder %s143, 0
      %s146 = sadd.s32 %s145, 1
      %s147 = scalar_select %p144, %s145, %s146
      %p150 = pneg %p144
      %p151 = scmp.eq.s32.totalorder %s17, 7
      %p152 = por %p150, %p151
      %p153 = scmp.ne.s32.totalorder %s145, %s148
      %p154 = scmp.eq.s32.totalorder %s17, 0
      %p155 = por %p153, %p154
      %p156 = scmp.ne.s32.totalorder %s145, %s148
      %p157 = scmp.eq.s32.totalorder %s22, 7
      %p158 = por %p156, %p157
      %p159 = scmp.ne.s32.totalorder %s148, %s149
      %p160 = scmp.eq.s32.totalorder %s22, 0
      %p161 = por %p159, %p160
      %p162 = scmp.ne.s32.totalorder %s148, %s149
      %p163 = scmp.eq.s32.totalorder %s23, 7
      %p164 = por %p162, %p163
      %p166 = scmp.ne.s32.totalorder %s149, %s165
      %p167 = scmp.eq.s32.totalorder %s23, 0
      %p168 = por %p166, %p167
      %p169 = scmp.le.s32.totalorder 1, %s17
      %p170 = scmp.lt.s32.totalorder %s17, 9
      %p171 = pnand %p169, %p170
      %p172 = pneg %p171
      // Predicated region
      $region9: #{tpu_custom_call.1} parent=5 // pred_check
        _
      $region10: #{tpu_custom_call.1} parent=5 // pred_check_branch
        %174 = sbr.rel (%p171) target = $region12
      $region11: #{tpu_custom_call.1} parent=5 // pred_region
        %s175 = ssub.s32 %s17, 1
      $region12: #{tpu_custom_call.1} parent=5 // pred_fallthru
        _
      %p176 = scmp.lt.s32.totalorder %s17, 8
      // Predicated region
      $region13: #{tpu_custom_call.1} parent=5 // pred_check
        %p177 = pneg %p176
      $region14: #{tpu_custom_call.1} parent=5 // pred_check_branch
        %179 = sbr.rel (%p177) target = $region16
      $region15: #{tpu_custom_call.1} parent=5 // pred_region
        // Predicated region
        $region17: #{tpu_custom_call.1} parent=15 // pred_check
          %p180 = pneg %p49
        $region18: #{tpu_custom_call.1} parent=15 // pred_check_branch
          %182 = sbr.rel (%p180) target = $region20
        $region19: #{tpu_custom_call.1} parent=15 // pred_region
          %p183 = scmp.lt.s32.totalorder %s24, 1
          %s184 = scalar_select %p183, %s24, 1
          %s185 = smul.addr %s184, 8
          %s186 = scalar_lea.vmem %s0, %s185
        $region20: #{tpu_custom_call.1} parent=15 // pred_fallthru
          _
        // Predicated region
        $region21: #{tpu_custom_call.1} parent=15 // pred_check
          %p187 = pneg %p75
        $region22: #{tpu_custom_call.1} parent=15 // pred_check_branch
          %189 = sbr.rel (%p187) target = $region24
        $region23: #{tpu_custom_call.1} parent=15 // pred_region
          %p190 = scmp.lt.s32.totalorder %s25, 3
          %s191 = scalar_select %p190, %s25, 3
          %s192 = smul.addr %s191, 4
          %s193 = smul.addr %s192, 8
          %s194 = scalar_lea.vmem %s1, %s193
        $region24: #{tpu_custom_call.1} parent=15 // pred_fallthru
          _
        // Predicated region
        $region25: #{tpu_custom_call.1} parent=15 // pred_check
          %p195 = pneg %p101
        $region26: #{tpu_custom_call.1} parent=15 // pred_check_branch
          %197 = sbr.rel (%p195) target = $region28
        $region27: #{tpu_custom_call.1} parent=15 // pred_region
          %p198 = scmp.lt.s32.totalorder %s25, 3
          %s199 = scalar_select %p198, %s25, 3
          %s200 = scalar_lea.vmem %s2, %s199
        $region28: #{tpu_custom_call.1} parent=15 // pred_fallthru
          _
      $region16: #{tpu_custom_call.1} parent=5 // pred_fallthru
        _
      %p201 = scmp.le.s32.totalorder 1, %s17
      %p202 = scmp.lt.s32.totalorder %s17, 9
      %p203 = pnand %p201, %p202
      %p204 = pneg %p203
      // Predicated region
      $region29: #{tpu_custom_call.1} parent=5 // pred_check
        _
      $region30: #{tpu_custom_call.1} parent=5 // pred_check_branch
        %206 = sbr.rel (%p203) target = $region32
      $region31: #{tpu_custom_call.1} parent=5 // pred_region
        %s207 = ssub.s32 %s17, 1
        %p208 = scmp.lt.s32.totalorder %s26, 1
        %s209 = scalar_select %p208, %s26, 1
        %s210 = smul.addr %s209, 8
        %s211 = scalar_lea.vmem %s0, %s210
        %p212 = pneg %p55
        %p213 = pneg %p52
        %p214 = scmp.lt.s32.totalorder %s27, 3
        %s215 = scalar_select %p214, %s27, 3
        %s216 = smul.addr %s215, 4
        %s217 = smul.addr %s216, 8
        %s218 = scalar_lea.vmem %s1, %s217
        %p219 = pneg %p81
        %p220 = pneg %p78
        %p221 = scmp.lt.s32.totalorder %s27, 3
        %s222 = scalar_select %p221, %s27, 3
        %s223 = scalar_lea.vmem %s2, %s222
        %p224 = pneg %p107
        %p225 = pneg %p104
        %p226 = pneg %p133
        %p227 = pneg %p130
        %s228 = sand.u32 %s120, 1
        %s229 = scalar_lea.sflag [#allocation4], %s228
        %s230 = sand.u32 %s120, 1
        %s231 = smul.addr %s230, 8
        %s232 = scalar_lea.vmem [#allocation3], %s231
        %p233 = pneg %p161
        %p234 = pneg %p158
        %s235 = sand.u32 %s148, 1
        %s236 = scalar_lea.sflag [#allocation6], %s235
        %s237 = sand.u32 %s148, 1
        %s238 = smul.addr %s237, 8
        %s239 = scalar_lea.vmem [#allocation5], %s238
        %p240 = scmp.lt.s32.totalorder %s26, 1
        %s241 = scalar_select %p240, %s26, 1
        %s242 = smul.addr %s241, 8
        %s243 = scalar_lea.vmem %s0, %s242
        %p244 = scmp.lt.s32.totalorder %s27, 3
        %s245 = scalar_select %p244, %s27, 3
        %s246 = smul.addr %s245, 4
        %s247 = smul.addr %s246, 8
        %s248 = scalar_lea.vmem %s1, %s247
        %p249 = scmp.lt.s32.totalorder %s27, 3
        %s250 = scalar_select %p249, %s27, 3
        %s251 = scalar_lea.vmem %s2, %s250
        %v252 = vld [vmem:[%s243] sm:$0xff]
        %v253 = vld [vmem:[%s248] sm:$0xff]
        %v254 = vld [vmem:[%s248 + $0x8] sm:$0xff]
        %v255 = vld [vmem:[%s248 + $0x10] sm:$0xff]
        %v256 = vld [vmem:[%s248 + $0x18] sm:$0xff]
        %v257 = vld [vmem:[%s251] sm:$0x1]
        %v259 = vlaneseq
        %v260 = vshrl.u32 %v259, 7
        %v261 = vsub.s32 0, %v260
        %v262 = vrot.slane %v257, %v261
        %vm264 = vcmask 261120
        %v266 = vsel %vm264, %v252, 0
        %268 = vmatprep.subr.mxu0 0.0
        %269 = vmatpush1.msra.mxu0 %v253
        %270 = vmatprep.subr.mxu0 0.0
        %271 = vmatpush1.msra.mxu0 %v254
        %272 = vmatprep.subr.mxu0 0.0
        %273 = vmatpush1.msra.mxu0 %v255
        %274 = vmatprep.subr.mxu0 0.0
        %275 = vmatpush1.msra.mxu0 %v256
        %276 = vmatprep.subr.mxu0 0.0
        %277 = vmatpush1.msra.mxu0 0.0
        %278 = vmatprep.subr.mxu0 0.0
        %279 = vmatpush1.msra.mxu0 0.0
        %280 = vmatprep.subr.mxu0 0.0
        %281 = vmatpush1.msra.mxu0 0.0
        %282 = vmatprep.subr.mxu0 0.0
        %283 = vmatpush1.msra.mxu0 0.0
        %284 = vmatprep.subr.mxu0 0.0
        %285 = vmatpush1.msra.mxu0 0.0
        %286 = vmatprep.subr.mxu0 0.0
        %287 = vmatpush1.msra.mxu0 0.0
        %288 = vmatprep.subr.mxu0 0.0
        %289 = vmatpush1.msra.mxu0 0.0
        %290 = vmatprep.subr.mxu0 0.0
        %291 = vmatpush1.msra.mxu0 0.0
        %292 = vmatprep.subr.mxu0 0.0
        %293 = vmatpush1.msra.mxu0 0.0
        %294 = vmatprep.subr.mxu0 0.0
        %295 = vmatpush1.msra.mxu0 0.0
        %296 = vmatprep.subr.mxu0 0.0
        %297 = vmatpush1.msra.mxu0 0.0
        %298 = vmatprep.subr.mxu0 0.0
        %299 = vmatpush1.msra.mxu0 0.0
        %300 = vmatprep.subr.mxu0 0.0
        %301 = vmatpush1.msra.mxu0 0.0
        %302 = vmatprep.subr.mxu0 0.0
        %303 = vmatpush1.msra.mxu0 0.0
        %304 = vmatprep.subr.mxu0 0.0
        %305 = vmatpush1.msra.mxu0 0.0
        %306 = vmatprep.subr.mxu0 0.0
        %307 = vmatpush1.msra.mxu0 0.0
        %308 = vmatprep.subr.mxu0 0.0
        %309 = vmatpush1.msra.mxu0 0.0
        %310 = vmatprep.subr.mxu0 0.0
        %311 = vmatpush1.msra.mxu0 0.0
        %312 = vmatprep.subr.mxu0 0.0
        %313 = vmatpush1.msra.mxu0 0.0
        %314 = vmatprep.subr.mxu0 0.0
        %315 = vmatpush1.msra.mxu0 0.0
        %316 = vmatprep.subr.mxu0 0.0
        %317 = vmatpush1.msra.mxu0 0.0
        %318 = vmatprep.subr.mxu0 0.0
        %319 = vmatpush1.msra.mxu0 0.0
        %320 = vmatprep.subr.mxu0 0.0
        %321 = vmatpush1.msra.mxu0 0.0
        %322 = vmatprep.subr.mxu0 0.0
        %323 = vmatpush1.msra.mxu0 0.0
        %324 = vmatprep.subr.mxu0 0.0
        %325 = vmatpush1.msra.mxu0 0.0
        %326 = vmatprep.subr.mxu0 0.0
        %327 = vmatpush1.msra.mxu0 0.0
        %328 = vmatprep.subr.mxu0 0.0
        %329 = vmatpush1.msra.mxu0 0.0
        %330 = vmatprep.subr.mxu0 0.0
        %331 = vmatpush1.msra.mxu0 0.0
        %332 = vmatprep.mubr.f32.mxu0 0.0
        %333 = vmatmul.mubr.f32.gmra.mrb[0].mxu0 %v266
        %v334 = vpop.f32.mrb[0].mxu0
        %v335 = vadd.f32 %v262, %v334
        %v336 = vpop.f32.mrb[0].mxu0
        %337 = vdwg.mxu0
        %339 = vrot.lane.b32.xlu0 %v335, 120
        %v340 = vpop.permute.xlu0 %339
        %vm341 = vcmask 64512
        %v342 = vsel %vm341, %v335, 0
        %v344 = vsel %vm341, %v340, 0
        %346 = vmatprep.subr.mxu0 0.0
        %347 = vmatpush1.xpose.msra.mxu0 %v344
        %348 = vmatprep.subr.mxu0 0.0
        %349 = vmatpush1.xpose.msra.mxu0 0.0
        %350 = vmatprep.subr.mxu0 0.0
        %351 = vmatpush1.xpose.msra.mxu0 0.0
        %352 = vmatprep.subr.mxu0 0.0
        %353 = vmatpush1.xpose.msra.mxu0 0.0
        %354 = vmatprep.subr.mxu0 0.0
        %355 = vmatpush1.xpose.msra.mxu0 0.0
        %356 = vmatprep.subr.mxu0 0.0
        %357 = vmatpush1.xpose.msra.mxu0 0.0
        %358 = vmatprep.subr.mxu0 0.0
        %359 = vmatpush1.xpose.msra.mxu0 0.0
        %360 = vmatprep.subr.mxu0 0.0
        %361 = vmatpush1.xpose.msra.mxu0 0.0
        %362 = vmatprep.subr.mxu0 0.0
        %363 = vmatpush1.xpose.msra.mxu0 0.0
        %364 = vmatprep.subr.mxu0 0.0
        %365 = vmatpush1.xpose.msra.mxu0 0.0
        %366 = vmatprep.subr.mxu0 0.0
        %367 = vmatpush1.xpose.msra.mxu0 0.0
        %368 = vmatprep.subr.mxu0 0.0
        %369 = vmatpush1.xpose.msra.mxu0 0.0
        %370 = vmatprep.subr.mxu0 0.0
        %371 = vmatpush1.xpose.msra.mxu0 0.0
        %372 = vmatprep.subr.mxu0 0.0
        %373 = vmatpush1.xpose.msra.mxu0 0.0
        %374 = vmatprep.subr.mxu0 0.0
        %375 = vmatpush1.xpose.msra.mxu0 0.0
        %376 = vmatprep.subr.mxu0 0.0
        %377 = vmatpush1.xpose.msra.mxu0 0.0
        %378 = vmatprep.subr.mxu0 0.0
        %379 = vmatpush1.xpose.msra.mxu0 0.0
        %380 = vmatprep.subr.mxu0 0.0
        %381 = vmatpush1.xpose.msra.mxu0 0.0
        %382 = vmatprep.subr.mxu0 0.0
        %383 = vmatpush1.xpose.msra.mxu0 0.0
        %384 = vmatprep.subr.mxu0 0.0
        %385 = vmatpush1.xpose.msra.mxu0 0.0
        %386 = vmatprep.subr.mxu0 0.0
        %387 = vmatpush1.xpose.msra.mxu0 0.0
        %388 = vmatprep.subr.mxu0 0.0
        %389 = vmatpush1.xpose.msra.mxu0 0.0
        %390 = vmatprep.subr.mxu0 0.0
        %391 = vmatpush1.xpose.msra.mxu0 0.0
        %392 = vmatprep.subr.mxu0 0.0
        %393 = vmatpush1.xpose.msra.mxu0 0.0
        %394 = vmatprep.subr.mxu0 0.0
        %395 = vmatpush1.xpose.msra.mxu0 0.0
        %396 = vmatprep.subr.mxu0 0.0
        %397 = vmatpush1.xpose.msra.mxu0 0.0
        %398 = vmatprep.subr.mxu0 0.0
        %399 = vmatpush1.xpose.msra.mxu0 0.0
        %400 = vmatprep.subr.mxu0 0.0
        %401 = vmatpush1.xpose.msra.mxu0 0.0
        %402 = vmatprep.subr.mxu0 0.0
        %403 = vmatpush1.xpose.msra.mxu0 0.0
        %404 = vmatprep.subr.mxu0 0.0
        %405 = vmatpush1.xpose.msra.mxu0 0.0
        %406 = vmatprep.subr.mxu0 0.0
        %407 = vmatpush1.xpose.msra.mxu0 0.0
        %408 = vmatprep.subr.mxu0 0.0
        %409 = vmatpush1.xpose.msra.mxu0 0.0
        %410 = vmatprep.mubr.f32.mxu0 0.0
        %411 = vmatmul.mubr.f32.gmra.mrb[0].mxu0 %v342
        %v412 = vpop.f32.mrb[0].mxu0
        %v413 = vadd.f32 0.0, %v412
        %v414 = vpop.f32.mrb[0].mxu0
        %415 = vdwg.mxu0
        %v416 = vmul.f32 %v413, 0.35355338
        %v417 = vsel %vm341, %v416, -inf
        %418 = vmax.xlane.f32.xlu0 %v417
        %v419 = vpop.xlane.xlu0 %418
        %v420 = vsub.f32 %v416, %v419
        %v421 = vmul.f32 %v420, 1.442695
        %v422 = vpow.pop %v421
        %v423 = vsel %vm341, %v422, 0.0
        %424 = vadd.xlane.f32.xlu0 %v423
        %v425 = vpop.xlane.xlu0 %424
        %v426 = vrcp.pop %v425
        %v427 = vmul.f32 %v422, %v426
        %428 = vst.msk [vmem:[%s239] sm:$0xff] %vm341, %v427
        %429 = vrot.lane.b32.xlu0 %v335, 112
        %v430 = vpop.permute.xlu0 %429
        %v433 = vsel %vm341, %v427, 0
        %435 = vmatprep.subr.mxu0 0.0
        %436 = vmatpush1.msra.mxu0 %v430
        %437 = vmatprep.subr.mxu0 0.0
        %438 = vmatpush1.msra.mxu0 0.0
        %439 = vmatprep.subr.mxu0 0.0
        %440 = vmatpush1.msra.mxu0 0.0
        %441 = vmatprep.subr.mxu0 0.0
        %442 = vmatpush1.msra.mxu0 0.0
        %443 = vmatprep.subr.mxu0 0.0
        %444 = vmatpush1.msra.mxu0 0.0
        %445 = vmatprep.subr.mxu0 0.0
        %446 = vmatpush1.msra.mxu0 0.0
        %447 = vmatprep.subr.mxu0 0.0
        %448 = vmatpush1.msra.mxu0 0.0
        %449 = vmatprep.subr.mxu0 0.0
        %450 = vmatpush1.msra.mxu0 0.0
        %451 = vmatprep.subr.mxu0 0.0
        %452 = vmatpush1.msra.mxu0 0.0
        %453 = vmatprep.subr.mxu0 0.0
        %454 = vmatpush1.msra.mxu0 0.0
        %455 = vmatprep.subr.mxu0 0.0
        %456 = vmatpush1.msra.mxu0 0.0
        %457 = vmatprep.subr.mxu0 0.0
        %458 = vmatpush1.msra.mxu0 0.0
        %459 = vmatprep.subr.mxu0 0.0
        %460 = vmatpush1.msra.mxu0 0.0
        %461 = vmatprep.subr.mxu0 0.0
        %462 = vmatpush1.msra.mxu0 0.0
        %463 = vmatprep.subr.mxu0 0.0
        %464 = vmatpush1.msra.mxu0 0.0
        %465 = vmatprep.subr.mxu0 0.0
        %466 = vmatpush1.msra.mxu0 0.0
        %467 = vmatprep.subr.mxu0 0.0
        %468 = vmatpush1.msra.mxu0 0.0
        %469 = vmatprep.subr.mxu0 0.0
        %470 = vmatpush1.msra.mxu0 0.0
        %471 = vmatprep.subr.mxu0 0.0
        %472 = vmatpush1.msra.mxu0 0.0
        %473 = vmatprep.subr.mxu0 0.0
        %474 = vmatpush1.msra.mxu0 0.0
        %475 = vmatprep.subr.mxu0 0.0
        %476 = vmatpush1.msra.mxu0 0.0
        %477 = vmatprep.subr.mxu0 0.0
        %478 = vmatpush1.msra.mxu0 0.0
        %479 = vmatprep.subr.mxu0 0.0
        %480 = vmatpush1.msra.mxu0 0.0
        %481 = vmatprep.subr.mxu0 0.0
        %482 = vmatpush1.msra.mxu0 0.0
        %483 = vmatprep.subr.mxu0 0.0
        %484 = vmatpush1.msra.mxu0 0.0
        %485 = vmatprep.subr.mxu0 0.0
        %486 = vmatpush1.msra.mxu0 0.0
        %487 = vmatprep.subr.mxu0 0.0
        %488 = vmatpush1.msra.mxu0 0.0
        %489 = vmatprep.subr.mxu0 0.0
        %490 = vmatpush1.msra.mxu0 0.0
        %491 = vmatprep.subr.mxu0 0.0
        %492 = vmatpush1.msra.mxu0 0.0
        %493 = vmatprep.subr.mxu0 0.0
        %494 = vmatpush1.msra.mxu0 0.0
        %495 = vmatprep.subr.mxu0 0.0
        %496 = vmatpush1.msra.mxu0 0.0
        %497 = vmatprep.subr.mxu0 0.0
        %498 = vmatpush1.msra.mxu0 0.0
        %499 = vmatprep.mubr.f32.mxu0 0.0
        %500 = vmatmul.mubr.f32.gmra.mrb[0].mxu0 %v433
        %v501 = vpop.f32.mrb[0].mxu0
        %v502 = vadd.f32 0.0, %v501
        %v503 = vpop.f32.mrb[0].mxu0
        %504 = vdwg.mxu0
        %s505 = smul.u32 %s27, 8
        %s506 = scalar_lea.vmem [#allocation2], %s505
        %507 = vst.msk [vmem:[%s506] sm:$0xff] %vm341, %v502
        %p508 = scmp.eq.s32.totalorder %s27, 3
        // Predicated region
        $region33: #{tpu_custom_call.1} parent=31 // pred_check
          %p509 = pneg %p508
        $region34: #{tpu_custom_call.1} parent=31 // pred_check_branch
          %511 = sbr.rel (%p509) target = $region36
        $region35: #{tpu_custom_call.1} parent=31 // pred_region
          %v512 = vld [vmem:[#allocation2] sm:$0xff]
          %s513 = scalar_lea.vmem [#allocation2], 8
          %v514 = vld [vmem:[%s513] sm:$0xff]
          %s515 = scalar_lea.vmem [#allocation2], 16
          %v516 = vld [vmem:[%s515] sm:$0xff]
          %s517 = scalar_lea.vmem [#allocation2], 24
          %v518 = vld [vmem:[%s517] sm:$0xff]
          %520 = vrot.lane.b32.xlu0 %v514, 8
          %v521 = vpop.permute.xlu0 %520
          %524 = vrot.lane.b32.xlu0 %v516, 16
          %v525 = vpop.permute.xlu0 %524
          %528 = vrot.lane.b32.xlu0 %v518, 24
          %v529 = vpop.permute.xlu0 %528
          %v531 = vsel %vm341, %v512, %v521
          %vm532 = vcmask 130048
          %v533 = vsel %vm532, %v531, %v525
          %vm534 = vcmask 195584
          %v535 = vsel %vm534, %v533, %v529
          %536 = vst.msk [vmem:[%s232] sm:$0xff] %vm264, %v535
        $region36: #{tpu_custom_call.1} parent=31 // pred_fallthru
          _
        %s537 = sand.u32 %s120, 1
        %s538 = scalar_lea.sflag [#allocation4], %s537
        %s539 = sand.u32 %s120, 1
        %s540 = smul.addr %s539, 8
        %s541 = scalar_lea.vmem [#allocation3], %s540
        %s542 = sand.u32 %s148, 1
        %s543 = scalar_lea.sflag [#allocation6], %s542
        %s544 = sand.u32 %s148, 1
        %s545 = smul.addr %s544, 8
        %s546 = scalar_lea.vmem [#allocation5], %s545
        // Predicated region
        $region37: #{tpu_custom_call.1} parent=31 // pred_check
          %p547 = pneg %p130
        $region38: #{tpu_custom_call.1} parent=31 // pred_check_branch
          %549 = sbr.rel (%p547) target = $region40
        $region39: #{tpu_custom_call.1} parent=31 // pred_region
          %s551 = ssub.s32 128, 128
          %552 = vsyncadd %s538, %s551
          %s553 = smul.addr %s26, 128
          %s554 = scalar_lea.hbm %s3, %s553
          %s556 = sshll.u32 %s541, 4
          %s557 = int_to_ptr.vmem [resolvable:$true] %s556
          %559 = dma.vmem_to_hbm [thread:$0]  %s557, 128, %s554, %s538
        $region40: #{tpu_custom_call.1} parent=31 // pred_fallthru
          _
        // Predicated region
        $region41: #{tpu_custom_call.1} parent=31 // pred_check
          %p560 = pneg %p158
        $region42: #{tpu_custom_call.1} parent=31 // pred_check_branch
          %562 = sbr.rel (%p560) target = $region44
        $region43: #{tpu_custom_call.1} parent=31 // pred_region
          %s564 = ssub.s32 128, 128
          %565 = vsyncadd %s543, %s564
          %s566 = smul.addr %s26, 4
          %s567 = sadd.s32 %s27, %s566
          %s568 = smul.addr %s567, 128
          %s569 = scalar_lea.hbm %s4, %s568
          %s571 = sshll.u32 %s546, 4
          %s572 = int_to_ptr.vmem [resolvable:$true] %s571
          %574 = dma.vmem_to_hbm [thread:$0]  %s572, 128, %s569, %s543
        $region44: #{tpu_custom_call.1} parent=31 // pred_fallthru
          _
      $region32: #{tpu_custom_call.1} parent=5 // pred_fallthru
        _
      %p575 = scmp.le.s32.totalorder 2, %s17
      // Predicated region
      $region45: #{tpu_custom_call.1} parent=5 // pred_check
        %p576 = pneg %p575
      $region46: #{tpu_custom_call.1} parent=5 // pred_check_branch
        %578 = sbr.rel (%p576) target = $region48
      $region47: #{tpu_custom_call.1} parent=5 // pred_region
        %s579 = ssub.s32 %s17, 2
        // Predicated region
        $region49: #{tpu_custom_call.1} parent=47 // pred_check
          %p580 = pneg %p136
        $region50: #{tpu_custom_call.1} parent=47 // pred_check_branch
          %582 = sbr.rel (%p580) target = $region52
        $region51: #{tpu_custom_call.1} parent=47 // pred_region
          %s583 = sand.u32 %s121, 1
          %s584 = scalar_lea.sflag [#allocation4], %s583
          %s585 = sand.u32 %s121, 1
          %s586 = smul.addr %s585, 8
          %s587 = scalar_lea.vmem [#allocation3], %s586
          %588 = dma.done %s584, 128
        $region52: #{tpu_custom_call.1} parent=47 // pred_fallthru
          _
        // Predicated region
        $region53: #{tpu_custom_call.1} parent=47 // pred_check
          %p589 = pneg %p164
        $region54: #{tpu_custom_call.1} parent=47 // pred_check_branch
          %591 = sbr.rel (%p589) target = $region56
        $region55: #{tpu_custom_call.1} parent=47 // pred_region
          %s592 = sand.u32 %s149, 1
          %s593 = scalar_lea.sflag [#allocation6], %s592
          %s594 = sand.u32 %s149, 1
          %s595 = smul.addr %s594, 8
          %s596 = scalar_lea.vmem [#allocation5], %s595
          %597 = dma.done %s593, 128
        $region56: #{tpu_custom_call.1} parent=47 // pred_fallthru
          _
      $region48: #{tpu_custom_call.1} parent=5 // pred_fallthru
        _
    $region6: #{tpu_custom_call.1} parent=1 // loop_footer
      %s21 = sadd.s32 1, %s17
    $region7: #{tpu_custom_call.1} parent=1 // loop_footer_branch
      %16 = sbr.rel target = $region3
    $region8: #{tpu_custom_call.1} parent=1 // loop_exit
      _
    %598 = vsyncpa [#allocation4], 1
    %s599 = scalar_lea.sflag [#allocation4], 1
    %600 = vsyncpa %s599, 1
    %601 = vsyncpa [#allocation6], 1
    %s602 = scalar_lea.sflag [#allocation6], 1
    %603 = vsyncpa %s602, 1

</llo_original>
